<compile_context>
chip_gen: v5e
topology: v5e:2x2
jax: 0.10.0
libtpu: 0.0.40
codegen_flags: <defaults>
</compile_context>

<pallas_src>
import functools

import jax
import jax.numpy as jnp
from jax.experimental import pallas as pl
from jax.experimental.pallas import tpu as pltpu

_SUBLANE = 8  # sublane width (second-to-last dim granularity)


def _round_up(n: int, m: int) -> int:
    return ((n + m - 1) // m) * m


def encoder_kernel(x_ref, w1_ref, b1_ref, w2_ref, b2_ref, wh_ref, bh_ref, out_ref):
    """One batch tile: two ReLU-Linear layers + fused (mu|logvar) head."""
    cdt = w1_ref.dtype  # MXU operand dtype (bf16 by default); accumulation is f32.
    x = x_ref[...].astype(cdt)

    # Layer 1: Linear + ReLU (MXU matmul, f32 accumulation; bias/ReLU in f32)
    h = jnp.dot(x, w1_ref[...], preferred_element_type=jnp.float32) + b1_ref[...]
    h = jnp.maximum(h, 0.0)

    # Layer 2: Linear + ReLU
    h = jnp.dot(h.astype(cdt), w2_ref[...],
                preferred_element_type=jnp.float32) + b2_ref[...]
    h = jnp.maximum(h, 0.0)

    # Fused heads: one matmul producing [mu | logvar]
    out = jnp.dot(h.astype(cdt), wh_ref[...],
                  preferred_element_type=jnp.float32) + bh_ref[...]
    out_ref[...] = out.astype(out_ref.dtype)


def init_params(key, x_dim, h_dim, z_dim):
    """Deterministic init mimicking torch.nn.Linear (U[-1/sqrt(fan_in), 1/sqrt(fan_in)]).

    Weights are stored as (in_features, out_features) so the kernel does x @ W.
    """
    def linear(key, fan_in, fan_out):
        kw, kb = jax.random.split(key)
        bound = 1.0 / jnp.sqrt(fan_in)
        w = jax.random.uniform(kw, (fan_in, fan_out), jnp.float32, -bound, bound)
        b = jax.random.uniform(kb, (1, fan_out), jnp.float32, -bound, bound)
        return w, b

    k1, k2, k3, k4 = jax.random.split(key, 4)
    w1, b1 = linear(k1, x_dim, h_dim)
    w2, b2 = linear(k2, h_dim, h_dim)
    wmu, bmu = linear(k3, h_dim, z_dim)
    wlv, blv = linear(k4, h_dim, z_dim)
    return (w1, b1, w2, b2, wmu, bmu, wlv, blv)


def pack_params(params, dot_dtype=jnp.bfloat16):
    """One-time packing: fuse mu/logvar heads; weights in MXU dtype, biases f32.

    No lane padding: real feature dims are used directly (full-array-dim blocks).
    """
    w1, b1, w2, b2, wmu, bmu, wlv, blv = params
    wh = jnp.concatenate([wmu, wlv], axis=1)   # (h_dim, 2*z_dim)
    bh = jnp.concatenate([bmu, blv], axis=1)   # (1, 2*z_dim)
    return (w1.astype(dot_dtype), b1.astype(jnp.float32),
            w2.astype(dot_dtype), b2.astype(jnp.float32),
            wh.astype(dot_dtype), bh.astype(jnp.float32))


@functools.partial(jax.jit, static_argnames=("z_dim", "block_b"))
def encoder_forward(x, packed, *, z_dim, block_b=2048):
    """x: (B, x_dim) f32, packed: output of pack_params -> (mu, logvar), each (B, z_dim)."""
    B, x_dim = x.shape
    w1, b1, w2, b2, wh, bh = packed
    h_dim = w1.shape[1]
    z2 = wh.shape[1]  # 2 * z_dim

    # Batch tile: biggest tile up to block_b (VMEM headroom is ample — at
    # tb=2048 the x/out tiles are only a few hundred KiB even double-buffered).
    tb = min(block_b, _round_up(B, _SUBLANE))
    # v7x megacore: ensure the "parallel" batch axis has >= 2 grid steps when B
    # is big enough to split, so the second TensorCore gets work.
    if pl.cdiv(B, tb) < 2 and B > 2 * _SUBLANE:
        tb = _round_up(pl.cdiv(B, 2), _SUBLANE)
    grid = (pl.cdiv(B, tb),)  # edge block is clipped by Pallas; rows independent

    flops = 2 * B * (x_dim * h_dim + h_dim * h_dim + h_dim * z2)
    param_bytes = sum(int(a.size) * a.dtype.itemsize for a in packed)
    bytes_accessed = int(x.size) * x.dtype.itemsize + param_bytes + B * z2 * 4

    out = pl.pallas_call(
        encoder_kernel,
        out_shape=jax.ShapeDtypeStruct((B, z2), jnp.float32),
        grid=grid,
        in_specs=[
            # x tile marches over the batch; true feature width (full-dim block).
            pl.BlockSpec((tb, x_dim), lambda i: (i, 0)),
            # Weights / biases: constant index_map -> fetched once, VMEM-resident.
            pl.BlockSpec((x_dim, h_dim), lambda i: (0, 0)),
            pl.BlockSpec((1, h_dim), lambda i: (0, 0)),
            pl.BlockSpec((h_dim, h_dim), lambda i: (0, 0)),
            pl.BlockSpec((1, h_dim), lambda i: (0, 0)),
            pl.BlockSpec((h_dim, z2), lambda i: (0, 0)),
            pl.BlockSpec((1, z2), lambda i: (0, 0)),
        ],
        out_specs=pl.BlockSpec((tb, z2), lambda i: (i, 0)),
        compiler_params=pltpu.CompilerParams(
            dimension_semantics=("parallel",),  # megacore sharding on v7x
        ),
        cost_estimate=pl.CostEstimate(
            flops=flops, transcendentals=0, bytes_accessed=bytes_accessed),
    )(x, w1, b1, w2, b2, wh, bh)

    mu = out[:, :z_dim]
    logvar = out[:, z_dim:]
    return mu, logvar


def encoder_ref(x, params):
    """Pure-JAX f32 reference for correctness checking (unfused heads)."""
    w1, b1, w2, b2, wmu, bmu, wlv, blv = params
    h = jnp.maximum(x @ w1 + b1, 0.0)
    h = jnp.maximum(h @ w2 + b2, 0.0)
    return h @ wmu + bmu, h @ wlv + blv


if __name__ == "__main__":
    # Small shapes consistent with the module: batch=8, x_dim=16, h_dim=32, z_dim=8
    B, X_DIM, H_DIM, Z_DIM = 8, 16, 32, 8

    key = jax.random.PRNGKey(0)
    kx, kp = jax.random.split(key)
    x = jax.random.normal(kx, (B, X_DIM), dtype=jnp.float32)
    params = init_params(kp, X_DIM, H_DIM, Z_DIM)
    packed = jax.tree_util.tree_map(jax.block_until_ready, pack_params(params))

    mu, logvar = encoder_forward(x, packed, z_dim=Z_DIM)
    jax.block_until_ready((mu, logvar))

    mu_ref, logvar_ref = encoder_ref(x, params)
    assert mu.shape == (B, Z_DIM) and logvar.shape == (B, Z_DIM)
    # bf16 MXU operands with f32 accumulation: ~1e-2-level relative agreement.
    assert jnp.allclose(mu, mu_ref, atol=3e-2, rtol=3e-2)
    assert jnp.allclose(logvar, logvar_ref, atol=3e-2, rtol=3e-2)

    print("KERNEL_OK")
</pallas_src>

<mosaic_0001>
module attributes {stable_mosaic.version = 11 : i64} {
  func.func @encoder_kernel(%arg0: i32, %arg1: memref<8x16xf32, #tpu.memory_space<vmem>>, %arg2: memref<16x32xbf16, #tpu.memory_space<vmem>>, %arg3: memref<1x32xf32, #tpu.memory_space<vmem>>, %arg4: memref<32x32xbf16, #tpu.memory_space<vmem>>, %arg5: memref<1x32xf32, #tpu.memory_space<vmem>>, %arg6: memref<32x16xbf16, #tpu.memory_space<vmem>>, %arg7: memref<1x16xf32, #tpu.memory_space<vmem>>, %arg8: memref<8x16xf32, #tpu.memory_space<vmem>>) attributes {dimension_semantics = [#tpu.dimension_semantics<parallel>], iteration_bounds = array<i64: 1>, scalar_prefetch = 0 : i64, scratch_operands = 0 : i64, tpu.core_type = #tpu.core_type<tc>, window_params = [{transform_indices = @transform_0, window_bounds = array<i64: 8, 16>}, {pipeline_mode = #tpu.pipeline_mode<synchronous>, transform_indices = @transform_1, window_bounds = array<i64: 16, 32>}, {pipeline_mode = #tpu.pipeline_mode<synchronous>, transform_indices = @transform_2, window_bounds = array<i64: 1, 32>}, {pipeline_mode = #tpu.pipeline_mode<synchronous>, transform_indices = @transform_3, window_bounds = array<i64: 32, 32>}, {pipeline_mode = #tpu.pipeline_mode<synchronous>, transform_indices = @transform_4, window_bounds = array<i64: 1, 32>}, {pipeline_mode = #tpu.pipeline_mode<synchronous>, transform_indices = @transform_5, window_bounds = array<i64: 32, 16>}, {pipeline_mode = #tpu.pipeline_mode<synchronous>, transform_indices = @transform_6, window_bounds = array<i64: 1, 16>}, {transform_indices = @transform_7, window_bounds = array<i64: 8, 16>}]} {
    %c0 = arith.constant 0 : index
    %c0_0 = arith.constant 0 : index
    %0 = vector.load %arg1[%c0, %c0_0] : memref<8x16xf32, #tpu.memory_space<vmem>>, vector<8x16xf32>
    %1 = arith.truncf %0 : vector<8x16xf32> to vector<8x16xbf16>
    %c0_1 = arith.constant 0 : index
    %c0_2 = arith.constant 0 : index
    %2 = vector.load %arg2[%c0_1, %c0_2] : memref<16x32xbf16, #tpu.memory_space<vmem>>, vector<16x32xbf16>
    %cst = arith.constant dense<0.000000e+00> : vector<8x32xf32>
    %3 = tpu.matmul %1, %2, %cst {dimension_numbers = #tpu.dot_dimension_numbers<[1], [0], [0], [1], [0, 0, 1, 1], [], []>} : vector<8x16xbf16>, vector<16x32xbf16>, vector<8x32xf32> -> vector<8x32xf32>
    %c0_3 = arith.constant 0 : index
    %c0_4 = arith.constant 0 : index
    %4 = vector.load %arg3[%c0_3, %c0_4] : memref<1x32xf32, #tpu.memory_space<vmem>>, vector<1x32xf32>
    %5 = vector.broadcast %4 : vector<1x32xf32> to vector<8x32xf32>
    %6 = arith.addf %3, %5 : vector<8x32xf32>
    %cst_5 = arith.constant 0.000000e+00 : f32
    %7 = vector.broadcast %cst_5 : f32 to vector<8x32xf32>
    %8 = arith.maximumf %6, %7 : vector<8x32xf32>
    %9 = arith.truncf %8 : vector<8x32xf32> to vector<8x32xbf16>
    %c0_6 = arith.constant 0 : index
    %c0_7 = arith.constant 0 : index
    %10 = vector.load %arg4[%c0_6, %c0_7] : memref<32x32xbf16, #tpu.memory_space<vmem>>, vector<32x32xbf16>
    %cst_8 = arith.constant dense<0.000000e+00> : vector<8x32xf32>
    %11 = tpu.matmul %9, %10, %cst_8 {dimension_numbers = #tpu.dot_dimension_numbers<[1], [0], [0], [1], [0, 0, 1, 1], [], []>} : vector<8x32xbf16>, vector<32x32xbf16>, vector<8x32xf32> -> vector<8x32xf32>
    %c0_9 = arith.constant 0 : index
    %c0_10 = arith.constant 0 : index
    %12 = vector.load %arg5[%c0_9, %c0_10] : memref<1x32xf32, #tpu.memory_space<vmem>>, vector<1x32xf32>
    %13 = vector.broadcast %12 : vector<1x32xf32> to vector<8x32xf32>
    %14 = arith.addf %11, %13 : vector<8x32xf32>
    %cst_11 = arith.constant 0.000000e+00 : f32
    %15 = vector.broadcast %cst_11 : f32 to vector<8x32xf32>
    %16 = arith.maximumf %14, %15 : vector<8x32xf32>
    %17 = arith.truncf %16 : vector<8x32xf32> to vector<8x32xbf16>
    %c0_12 = arith.constant 0 : index
    %c0_13 = arith.constant 0 : index
    %18 = vector.load %arg6[%c0_12, %c0_13] : memref<32x16xbf16, #tpu.memory_space<vmem>>, vector<32x16xbf16>
    %cst_14 = arith.constant dense<0.000000e+00> : vector<8x16xf32>
    %19 = tpu.matmul %17, %18, %cst_14 {dimension_numbers = #tpu.dot_dimension_numbers<[1], [0], [0], [1], [0, 0, 1, 1], [], []>} : vector<8x32xbf16>, vector<32x16xbf16>, vector<8x16xf32> -> vector<8x16xf32>
    %c0_15 = arith.constant 0 : index
    %c0_16 = arith.constant 0 : index
    %20 = vector.load %arg7[%c0_15, %c0_16] : memref<1x16xf32, #tpu.memory_space<vmem>>, vector<1x16xf32>
    %21 = vector.broadcast %20 : vector<1x16xf32> to vector<8x16xf32>
    %22 = arith.addf %19, %21 : vector<8x16xf32>
    %c0_17 = arith.constant 0 : index
    %c0_18 = arith.constant 0 : index
    %23 = vector.load %arg8[%c0_17, %c0_18] : memref<8x16xf32, #tpu.memory_space<vmem>>, vector<8x16xf32>
    tpu.vector_store %arg8[%c0_17, %c0_18], %22 {strides = array<i32>} : memref<8x16xf32, #tpu.memory_space<vmem>>, vector<8x16xf32>,
    return
  }
  func.func @transform_0(%arg0: i32) -> (i32, i32) {
    %c0_i32 = arith.constant 0 : i32
    %c0_i32_0 = arith.constant 0 : i32
    return %arg0, %c0_i32 : i32, i32
  }
  func.func @transform_1(%arg0: i32) -> (i32, i32) {
    %c0_i32 = arith.constant 0 : i32
    %c0_i32_0 = arith.constant 0 : i32
    %c0_i32_1 = arith.constant 0 : i32
    return %c0_i32, %c0_i32_0 : i32, i32
  }
  func.func @transform_2(%arg0: i32) -> (i32, i32) {
    %c0_i32 = arith.constant 0 : i32
    %c0_i32_0 = arith.constant 0 : i32
    %c0_i32_1 = arith.constant 0 : i32
    return %c0_i32, %c0_i32_0 : i32, i32
  }
  func.func @transform_3(%arg0: i32) -> (i32, i32) {
    %c0_i32 = arith.constant 0 : i32
    %c0_i32_0 = arith.constant 0 : i32
    %c0_i32_1 = arith.constant 0 : i32
    return %c0_i32, %c0_i32_0 : i32, i32
  }
  func.func @transform_4(%arg0: i32) -> (i32, i32) {
    %c0_i32 = arith.constant 0 : i32
    %c0_i32_0 = arith.constant 0 : i32
    %c0_i32_1 = arith.constant 0 : i32
    return %c0_i32, %c0_i32_0 : i32, i32
  }
  func.func @transform_5(%arg0: i32) -> (i32, i32) {
    %c0_i32 = arith.constant 0 : i32
    %c0_i32_0 = arith.constant 0 : i32
    %c0_i32_1 = arith.constant 0 : i32
    return %c0_i32, %c0_i32_0 : i32, i32
  }
  func.func @transform_6(%arg0: i32) -> (i32, i32) {
    %c0_i32 = arith.constant 0 : i32
    %c0_i32_0 = arith.constant 0 : i32
    %c0_i32_1 = arith.constant 0 : i32
    return %c0_i32, %c0_i32_0 : i32, i32
  }
  func.func @transform_7(%arg0: i32) -> (i32, i32) {
    %c0_i32 = arith.constant 0 : i32
    %c0_i32_0 = arith.constant 0 : i32
    return %arg0, %c0_i32 : i32, i32
  }
}

</mosaic_0001>

<llo_original>
// kernel: encoder_forward.1
$region0: #{encoder_forward.1}
  #allocation0 [shape = 'u32[]', space=smem, size = 0x4, offset = 0x4, fixed_abs, tag = 'smem constant byte address 0x4 - core index']
  #allocation1 [shape = 'u32[72,128]{1,0:T(1,128)}', space=vmem, size = 0x9000, scoped, tag = 'internal scratch']
  %s0 = inlined_call_operand.vmem [shape: f32[8,16], index: 0, kind: input, shape index: {}]
  %s1 = inlined_call_operand.hbm [shape: bf16[16,32], index: 1, kind: input, shape index: {}]
  %s2 = inlined_call_operand.vmem [shape: f32[1,32], index: 2, kind: input, shape index: {}]
  %s3 = inlined_call_operand.vmem [shape: bf16[32,32], index: 3, kind: input, shape index: {}]
  %s4 = inlined_call_operand.vmem [shape: f32[1,32], index: 4, kind: input, shape index: {}]
  %s5 = inlined_call_operand.vmem [shape: bf16[32,16], index: 5, kind: input, shape index: {}]
  %s6 = inlined_call_operand.vmem [shape: f32[1,16], index: 6, kind: input, shape index: {}]
  %s7 = inlined_call_operand.vmem [shape: f32[8,16], index: 7, kind: output, shape index: {}]
  %s8 = sld [smem:[#allocation0]]
  $region42: #{encoder_forward.1} parent=0
    _
  %s10 = ssub.s32 1, %s8
  %s11 = scalar_select 0, %s10, %s8
  $region1: #{encoder_forward.1} parent=0
    #allocation2 [shape = 'u8[4096]{0}', space=vmem, size = 0x1000, scoped, tag = 'input window, operand 1, single buffered']
    #allocation3 [shape = 's32[1]{0}', space=sflag, size = 0x4, scoped, tag = 'scoped memory for encoder_forward.1']
    %12 = vsyncpa [#allocation3], 0
    // Predicated region
    $region2: #{encoder_forward.1} parent=1 // pred_check
      _
    $region3: #{encoder_forward.1} parent=1 // pred_check_branch
      %14 = sbr.rel (0) target = $region5
    $region4: #{encoder_forward.1} parent=1 // pred_region
      _
    $region5: #{encoder_forward.1} parent=1 // pred_fallthru
      _
    // Predicated region
    $region6: #{encoder_forward.1} parent=1 // pred_check
      _
    $region7: #{encoder_forward.1} parent=1 // pred_check_branch
      %16 = sbr.rel (0) target = $region9
    $region8: #{encoder_forward.1} parent=1 // pred_region
      %18 = vsyncadd [#allocation3], 0
      %s19 = sshll.u32 %s1, 4
      %s20 = int_to_ptr.hbm [resolvable:$true] %s19
      %s21 = sshll.u32 [#allocation2], 4
      %s22 = int_to_ptr.vmem [resolvable:$true] %s21
      %27 = dma.hbm_to_vmem [thread:$0]  %s20, 128, %s22, [#allocation3], 64, 64, 4
    $region9: #{encoder_forward.1} parent=1 // pred_fallthru
      _
    // Predicated region
    $region10: #{encoder_forward.1} parent=1 // pred_check
      _
    $region11: #{encoder_forward.1} parent=1 // pred_check_branch
      %29 = sbr.rel (0) target = $region13
    $region12: #{encoder_forward.1} parent=1 // pred_region
      _
    $region13: #{encoder_forward.1} parent=1 // pred_fallthru
      _
    // Predicated region
    $region14: #{encoder_forward.1} parent=1 // pred_check
      _
    $region15: #{encoder_forward.1} parent=1 // pred_check_branch
      %31 = sbr.rel (0) target = $region17
    $region16: #{encoder_forward.1} parent=1 // pred_region
      _
    $region17: #{encoder_forward.1} parent=1 // pred_fallthru
      _
    // Predicated region
    $region18: #{encoder_forward.1} parent=1 // pred_check
      _
    $region19: #{encoder_forward.1} parent=1 // pred_check_branch
      %33 = sbr.rel (0) target = $region21
    $region20: #{encoder_forward.1} parent=1 // pred_region
      _
    $region21: #{encoder_forward.1} parent=1 // pred_fallthru
      _
    // Predicated region
    $region22: #{encoder_forward.1} parent=1 // pred_check
      _
    $region23: #{encoder_forward.1} parent=1 // pred_check_branch
      %35 = sbr.rel (0) target = $region25
    $region24: #{encoder_forward.1} parent=1 // pred_region
      _
    $region25: #{encoder_forward.1} parent=1 // pred_fallthru
      _
    // Predicated region
    $region26: #{encoder_forward.1} parent=1 // pred_check
      _
    $region27: #{encoder_forward.1} parent=1 // pred_check_branch
      %37 = sbr.rel (0) target = $region29
    $region28: #{encoder_forward.1} parent=1 // pred_region
      _
    $region29: #{encoder_forward.1} parent=1 // pred_fallthru
      _
    // Predicated region
    $region30: #{encoder_forward.1} parent=1 // pred_check
      _
    $region31: #{encoder_forward.1} parent=1 // pred_check_branch
      %39 = sbr.rel (0) target = $region33
    $region32: #{encoder_forward.1} parent=1 // pred_region
      %41 = dma.done [#allocation3], 128
    $region33: #{encoder_forward.1} parent=1 // pred_fallthru
      _
    %v43 = vld [vmem:[%s0] sm:$0xff]
    %v44 = vpack.c.bf16 %v43, %v43
    %v45 = vld [vmem:[#allocation2] sm:$0xf]
    %v46 = vld [vmem:[#allocation2 + $0x4] sm:$0xf]
    %v47 = vld [vmem:[%s2] sm:$0x1]
    %v49 = vperm.slane %v47, 0
    %v53 = vunpack.c.l.b16 %v45
    %v54 = vunpack.c.l.b16 %v46
    %v55 = vpack.c.b16 %v54, %v53
    %vm57 = vcmask 130048
    %v59 = vsel %vm57, %v44, 0
    %61 = vmatpush.bf16.msra.mxu0 0
    %62 = vmatpush.bf16.msra.mxu0 0
    %63 = vmatpush.bf16.msra.mxu0 0
    %64 = vmatpush.bf16.msra.mxu0 0
    %65 = vmatpush.bf16.msra.mxu0 0
    %66 = vmatpush.bf16.msra.mxu0 0
    %67 = vmatpush.bf16.msra.mxu0 0
    %68 = vmatpush.bf16.msra.mxu0 %v55
    %69 = vmatmul.bf16.gmra.mxu0 %v59
    %v70 = vpop.f32.mrf.mxu0
    %v71 = vadd.f32 %v49, %v70
    %v72 = vpop.f32.mrf.mxu0
    %73 = vdwg.mxu0
    %v74 = vmax.f32 %v71, 0.0
    %v75 = vpack.c.bf16 %v74, %v74
    %v76 = vld [vmem:[%s3] sm:$0xf]
    %v77 = vld [vmem:[%s3 + $0x4] sm:$0xf]
    %v78 = vld [vmem:[%s3 + $0x8] sm:$0xf]
    %v79 = vld [vmem:[%s3 + $0xc] sm:$0xf]
    %v80 = vld [vmem:[%s4] sm:$0x1]
    %v82 = vperm.slane %v80, 0
    %v88 = vunpack.c.l.b16 %v76
    %v89 = vunpack.c.l.b16 %v77
    %v90 = vunpack.c.l.b16 %v78
    %v91 = vunpack.c.l.b16 %v79
    %v92 = vpack.c.b16 %v89, %v88
    %v93 = vpack.c.b16 %v91, %v90
    %vm96 = vcmask 261120
    %v98 = vsel %vm96, %v75, 0
    %100 = vmatpush.bf16.msra.mxu0 0
    %101 = vmatpush.bf16.msra.mxu0 0
    %102 = vmatpush.bf16.msra.mxu0 0
    %103 = vmatpush.bf16.msra.mxu0 0
    %104 = vmatpush.bf16.msra.mxu0 0
    %105 = vmatpush.bf16.msra.mxu0 0
    %106 = vmatpush.bf16.msra.mxu0 %v93
    %107 = vmatpush.bf16.msra.mxu0 %v92
    %108 = vmatmul.bf16.gmra.mxu0 %v98
    %v109 = vpop.f32.mrf.mxu0
    %v110 = vadd.f32 %v82, %v109
    %v111 = vpop.f32.mrf.mxu0
    %112 = vdwg.mxu0
    %v113 = vmax.f32 %v110, 0.0
    %v114 = vpack.c.bf16 %v113, %v113
    %v115 = vld [vmem:[%s5] sm:$0xf]
    %v116 = vld [vmem:[%s5 + $0x4] sm:$0xf]
    %v117 = vld [vmem:[%s5 + $0x8] sm:$0xf]
    %v118 = vld [vmem:[%s5 + $0xc] sm:$0xf]
    %v119 = vld [vmem:[%s6] sm:$0x1]
    %v121 = vperm.slane %v119, 0
    %v127 = vunpack.c.l.b16 %v115
    %v128 = vunpack.c.l.b16 %v116
    %v129 = vunpack.c.l.b16 %v117
    %v130 = vunpack.c.l.b16 %v118
    %v131 = vpack.c.b16 %v128, %v127
    %v132 = vpack.c.b16 %v130, %v129
    %v136 = vsel %vm96, %v114, 0
    %138 = vmatpush.bf16.msra.mxu0 0
    %139 = vmatpush.bf16.msra.mxu0 0
    %140 = vmatpush.bf16.msra.mxu0 0
    %141 = vmatpush.bf16.msra.mxu0 0
    %142 = vmatpush.bf16.msra.mxu0 0
    %143 = vmatpush.bf16.msra.mxu0 0
    %144 = vmatpush.bf16.msra.mxu0 %v132
    %145 = vmatpush.bf16.msra.mxu0 %v131
    %146 = vmatmul.bf16.gmra.mxu0 %v136
    %v147 = vpop.f32.mrf.mxu0
    %v148 = vadd.f32 %v121, %v147
    %v149 = vpop.f32.mrf.mxu0
    %150 = vdwg.mxu0
    %151 = vst.msk [vmem:[%s7] sm:$0xff] %vm57, %v148
    // Predicated region
    $region34: #{encoder_forward.1} parent=1 // pred_check
      _
    $region35: #{encoder_forward.1} parent=1 // pred_check_branch
      %153 = sbr.rel (0) target = $region37
    $region36: #{encoder_forward.1} parent=1 // pred_region
      _
    $region37: #{encoder_forward.1} parent=1 // pred_fallthru
      _
    // Predicated region
    $region38: #{encoder_forward.1} parent=1 // pred_check
      _
    $region39: #{encoder_forward.1} parent=1 // pred_check_branch
      %155 = sbr.rel (0) target = $region41
    $region40: #{encoder_forward.1} parent=1 // pred_region
      _
    $region41: #{encoder_forward.1} parent=1 // pred_fallthru
      _
    %156 = vsyncpa [#allocation3], 1

</llo_original>
